<compile_context>
chip_gen: v6e
topology: v6e:2x2x1
jax: 0.10.0
libtpu: 0.0.40
codegen_flags: <defaults>
</compile_context>

<pallas_src>
import functools

import jax
import jax.numpy as jnp
from jax.experimental import pallas as pl
from jax.experimental.pallas import tpu as pltpu


def _round_up(a: int, b: int) -> int:
    return ((a + b - 1) // b) * b


def _cdiv(a: int, b: int) -> int:
    return (a + b - 1) // b


def mlp_kernel(x_ref, w1_ref, w2_ref, gamma_ref, beta_ref, o_ref, *, true_h: int):
    """Fused linear -> LayerNorm -> ReLU -> linear on one row tile.

    Weights arrive pre-transposed to (in, out); activations arrive pre-cast to
    the matmul dtype, so the kernel does no layout shuffles and no full-tile
    input casts.  All LayerNorm math stays in f32 (v5e-friendly).
    """
    h_pad = x_ref.shape[-1]

    # (tile_n, h_pad) @ (h_pad, h_pad) -> f32 accumulation on the MXU.
    h = jnp.dot(x_ref[...], w1_ref[...], preferred_element_type=jnp.float32)

    # LayerNorm over the true (unpadded) feature count.  Pad lanes of `h` are
    # exactly zero (W1 pad columns are zero), so the mean needs no mask.
    inv_h = jnp.float32(1.0 / true_h)
    mean = jnp.sum(h, axis=-1, keepdims=True) * inv_h
    centered = h - mean
    if true_h != h_pad:
        # Pad lanes of `centered` would hold -mean; re-zero them with a single
        # (1, h_pad) mask broadcast over rows (no full-tile iota/compare).
        lane = jax.lax.broadcasted_iota(jnp.int32, (1, h_pad), 1)
        centered = centered * (lane < true_h).astype(jnp.float32)
    var = jnp.sum(centered * centered, axis=-1, keepdims=True) * inv_h

    hn = centered * jax.lax.rsqrt(var + 1e-5)
    hn = hn * gamma_ref[...] + beta_ref[...]     # gamma/beta pads are 0 -> pads stay 0
    hn = jnp.maximum(hn, 0.0)

    y = jnp.dot(hn.astype(w2_ref.dtype), w2_ref[...],
                preferred_element_type=jnp.float32)
    o_ref[...] = y.astype(o_ref.dtype)


def prepare_params(w1, w2, gamma, beta, *, matmul_dtype=jnp.bfloat16):
    """One-time weight prep: transpose to (in, out), pad to 128 lanes, cast.

    Call once and reuse across forward passes (avoids re-padding / re-casting
    both weight matrices on every call).
    """
    H = w1.shape[0]
    h_pad = _round_up(max(H, 128), 128)
    f32 = jnp.float32

    def pad_w(w):
        wt = jnp.transpose(w).astype(matmul_dtype)           # (in, out) layout
        if H == h_pad:
            return wt
        return jnp.zeros((h_pad, h_pad), matmul_dtype).at[:H, :H].set(wt)

    w1_p = pad_w(w1)
    w2_p = pad_w(w2)
    gamma_p = jnp.zeros((1, h_pad), f32).at[0, :H].set(gamma.reshape(-1).astype(f32))
    beta_p = jnp.zeros((1, h_pad), f32).at[0, :H].set(beta.reshape(-1).astype(f32))
    return dict(w1=w1_p, w2=w2_p, gamma=gamma_p, beta=beta_p,
                H=H, h_pad=h_pad, matmul_dtype=matmul_dtype)


_VMEM_TILE_BUDGET = 40 * 1024 * 1024   # sizing budget: safe on v7x's 64 MiB VMEM
_VMEM_LIMIT_CAP = 56 * 1024 * 1024     # never request more scoped VMEM than this


def mlp_forward_prepared(x, params, *, tile_n_max: int = 1024, out_dtype=None):
    """x: (N, H) with params from prepare_params()."""
    N, H = x.shape
    assert H == params["H"], "prepared params built for a different hidden size"
    h_pad = params["h_pad"]
    matmul_dtype = params["matmul_dtype"]
    out_dtype = x.dtype if out_dtype is None else out_dtype

    bytes_x = jnp.dtype(matmul_dtype).itemsize
    bytes_out = jnp.dtype(out_dtype).itemsize
    bytes_w = jnp.dtype(matmul_dtype).itemsize

    # Grid-resident operands (W1, W2, gamma, beta), counting Pallas' default
    # double buffering.
    # TODO(synk): single-buffer the resident weights via pipeline_mode=
    # pl.Buffered(1) and add a K-tiling grid axis for W1/W2 when
    # 2*h_pad^2*bytes_w approaches the VMEM budget (very large H on v7x).
    resident = 2 * (2 * h_pad * h_pad * bytes_w) + 2 * (2 * h_pad * 4)
    # Per row: double-buffered x/out tiles + ~3 live f32 full-tile temps.
    per_row = h_pad * (2 * (bytes_x + bytes_out) + 3 * 4)
    avail = max(_VMEM_TILE_BUDGET - resident, 0)
    tile_cap = max(8, (avail // per_row) // 8 * 8)
    tile_n_max = max(8, min(tile_n_max, tile_cap))

    # Balance tiles to minimize row padding; keep >=2 grid steps when possible
    # so dimension_semantics=("parallel",) can shard rows over v7x's 2 TCs.
    n_r = _round_up(N, 8)
    num_tiles = max(_cdiv(n_r, tile_n_max), min(2, n_r // 8))
    tile_n = _round_up(_cdiv(N, num_tiles), 8)
    n_pad = tile_n * num_tiles

    # Activations: fold the matmul-dtype cast into the (optional) pad copy;
    # skip the copy entirely when already aligned.
    if N == n_pad and H == h_pad and x.dtype == matmul_dtype:
        x_p = x
    else:
        x_p = (jnp.zeros((n_pad, h_pad), matmul_dtype)
               .at[:N, :H].set(x.astype(matmul_dtype)))

    est = (resident
           + 2 * tile_n * h_pad * (bytes_x + bytes_out)
           + 3 * tile_n * h_pad * 4)
    vmem_limit = int(min(_VMEM_LIMIT_CAP, max(32 * 1024 * 1024, est * 3 // 2)))

    kernel = functools.partial(mlp_kernel, true_h=H)
    resident_map = lambda i: (0, 0)     # weights/affine stay put across row tiles

    out = pl.pallas_call(
        kernel,
        out_shape=jax.ShapeDtypeStruct((n_pad, h_pad), out_dtype),
        grid_spec=pltpu.PrefetchScalarGridSpec(
            num_scalar_prefetch=0,
            grid=(num_tiles,),
            in_specs=[
                pl.BlockSpec((tile_n, h_pad), lambda i: (i, 0)),   # x row tile
                pl.BlockSpec((h_pad, h_pad), resident_map),        # W1 (in, out)
                pl.BlockSpec((h_pad, h_pad), resident_map),        # W2 (in, out)
                pl.BlockSpec((1, h_pad), resident_map),            # gamma
                pl.BlockSpec((1, h_pad), resident_map),            # beta
            ],
            out_specs=pl.BlockSpec((tile_n, h_pad), lambda i: (i, 0)),
        ),
        compiler_params=pltpu.CompilerParams(
            dimension_semantics=("parallel",),    # shard row tiles across TCs (v7x)
            vmem_limit_bytes=vmem_limit,
        ),
    )(x_p, params["w1"], params["w2"], params["gamma"], params["beta"])
    return out[:N, :H]


def mlp_forward(x, w1, w2, gamma, beta, *, matmul_dtype=jnp.bfloat16,
                tile_n_max: int = 1024, out_dtype=None):
    """Convenience wrapper; for repeated calls, cache prepare_params() output."""
    params = prepare_params(w1, w2, gamma, beta, matmul_dtype=matmul_dtype)
    return mlp_forward_prepared(x, params, tile_n_max=tile_n_max,
                                out_dtype=out_dtype)


def mlp_reference(x, w1, w2, gamma, beta):
    """Pure-JAX reference with PyTorch semantics (f32 everywhere)."""
    h = x @ w1.T
    mean = jnp.mean(h, axis=-1, keepdims=True)
    var = jnp.mean((h - mean) ** 2, axis=-1, keepdims=True)
    h = (h - mean) * jax.lax.rsqrt(var + 1e-5)
    h = h * gamma + beta
    h = jnp.maximum(h, 0.0)
    return h @ w2.T


if __name__ == "__main__":
    hidden_dim = 32
    n_rows = 8   # batch of node features

    key = jax.random.PRNGKey(0)
    kx, k1, k2 = jax.random.split(key, 3)

    bound = 1.0 / jnp.sqrt(hidden_dim)
    x = jax.random.normal(kx, (n_rows, hidden_dim), dtype=jnp.float32)
    w1 = jax.random.uniform(k1, (hidden_dim, hidden_dim), jnp.float32, -bound, bound)
    w2 = jax.random.uniform(k2, (hidden_dim, hidden_dim), jnp.float32, -bound, bound)
    gamma = jnp.ones((hidden_dim,), jnp.float32)   # LayerNorm weight
    beta = jnp.zeros((hidden_dim,), jnp.float32)   # LayerNorm bias

    # TODO(synk): batch_norm=True (training-mode BatchNorm1d with running-stat
    # updates) is not implemented; this kernel covers the layer_norm=True config.

    ref_f32 = mlp_reference(x, w1, w2, gamma, beta)

    # Exact-semantics check with f32 matmuls (validates padding + masked LN).
    out_f32 = jax.block_until_ready(
        mlp_forward(x, w1, w2, gamma, beta, matmul_dtype=jnp.float32))
    assert out_f32.shape == (n_rows, hidden_dim)
    assert jnp.allclose(out_f32, ref_f32, atol=1e-4, rtol=1e-4), "f32 mismatch"

    # Performance config: bf16 MXU operands (weights + activations pre-cast in
    # the wrapper), f32 accumulation / LayerNorm, f32 output.
    out_bf16 = jax.block_until_ready(mlp_forward(x, w1, w2, gamma, beta))
    assert out_bf16.shape == (n_rows, hidden_dim)
    assert jnp.allclose(out_bf16, ref_f32, atol=3e-2, rtol=3e-2), "bf16 mismatch"

    print("KERNEL_OK")
</pallas_src>

<mosaic_0001>
module attributes {stable_mosaic.version = 11 : i64} {
  func.func @mlp_kernel(%arg0: i32, %arg1: memref<8x128xf32, #tpu.memory_space<vmem>>, %arg2: memref<128x128xf32, #tpu.memory_space<vmem>>, %arg3: memref<128x128xf32, #tpu.memory_space<vmem>>, %arg4: memref<1x128xf32, #tpu.memory_space<vmem>>, %arg5: memref<1x128xf32, #tpu.memory_space<vmem>>, %arg6: memref<8x128xf32, #tpu.memory_space<vmem>>) attributes {dimension_semantics = [#tpu.dimension_semantics<parallel>], iteration_bounds = array<i64: 1>, scalar_prefetch = 0 : i64, scratch_operands = 0 : i64, tpu.core_type = #tpu.core_type<tc>, window_params = [{transform_indices = @transform_0, window_bounds = array<i64: 8, 128>}, {pipeline_mode = #tpu.pipeline_mode<synchronous>, transform_indices = @transform_1, window_bounds = array<i64: 128, 128>}, {pipeline_mode = #tpu.pipeline_mode<synchronous>, transform_indices = @transform_2, window_bounds = array<i64: 128, 128>}, {pipeline_mode = #tpu.pipeline_mode<synchronous>, transform_indices = @transform_3, window_bounds = array<i64: 1, 128>}, {pipeline_mode = #tpu.pipeline_mode<synchronous>, transform_indices = @transform_4, window_bounds = array<i64: 1, 128>}, {transform_indices = @transform_5, window_bounds = array<i64: 8, 128>}]} {
    %c0 = arith.constant 0 : index
    %c0_0 = arith.constant 0 : index
    %0 = vector.load %arg1[%c0, %c0_0] : memref<8x128xf32, #tpu.memory_space<vmem>>, vector<8x128xf32>
    %c0_1 = arith.constant 0 : index
    %c0_2 = arith.constant 0 : index
    %1 = vector.load %arg2[%c0_1, %c0_2] : memref<128x128xf32, #tpu.memory_space<vmem>>, vector<128x128xf32>
    %cst = arith.constant dense<0.000000e+00> : vector<8x128xf32>
    %2 = tpu.matmul %0, %1, %cst {dimension_numbers = #tpu.dot_dimension_numbers<[1], [0], [0], [1], [0, 0, 1, 1], [], []>} : vector<8x128xf32>, vector<128x128xf32>, vector<8x128xf32> -> vector<8x128xf32>
    %cst_3 = arith.constant dense<0.000000e+00> : vector<8xf32>
    %3 = vector.multi_reduction <add>, %2, %cst_3 [1] : vector<8x128xf32> to vector<8xf32>
    %4 = vector.shape_cast %3 : vector<8xf32> to vector<8x1xf32>
    %cst_4 = arith.constant 3.125000e-02 : f32
    %5 = vector.broadcast %cst_4 : f32 to vector<8x1xf32>
    %6 = arith.mulf %4, %5 : vector<8x1xf32>
    %7 = vector.broadcast %6 : vector<8x1xf32> to vector<8x128xf32>
    %8 = arith.subf %2, %7 : vector<8x128xf32>
    %9 = tpu.iota {dimensions = array<i32: 1>} : vector<1x128xi32>
    %c32_i32 = arith.constant 32 : i32
    %10 = vector.broadcast %c32_i32 : i32 to vector<1x128xi32>
    %11 = arith.cmpi slt, %9, %10 : vector<1x128xi32>
    %12 = arith.extui %11 : vector<1x128xi1> to vector<1x128xi32>
    %13 = arith.sitofp %12 : vector<1x128xi32> to vector<1x128xf32>
    %14 = vector.broadcast %13 : vector<1x128xf32> to vector<8x128xf32>
    %15 = arith.mulf %8, %14 : vector<8x128xf32>
    %16 = arith.mulf %15, %15 : vector<8x128xf32>
    %cst_5 = arith.constant dense<0.000000e+00> : vector<8xf32>
    %17 = vector.multi_reduction <add>, %16, %cst_5 [1] : vector<8x128xf32> to vector<8xf32>
    %18 = vector.shape_cast %17 : vector<8xf32> to vector<8x1xf32>
    %cst_6 = arith.constant 3.125000e-02 : f32
    %19 = vector.broadcast %cst_6 : f32 to vector<8x1xf32>
    %20 = arith.mulf %18, %19 : vector<8x1xf32>
    %cst_7 = arith.constant 9.99999974E-6 : f32
    %21 = vector.broadcast %cst_7 : f32 to vector<8x1xf32>
    %22 = arith.addf %20, %21 : vector<8x1xf32>
    %23 = math.rsqrt %22 : vector<8x1xf32>
    %24 = vector.broadcast %23 : vector<8x1xf32> to vector<8x128xf32>
    %25 = arith.mulf %15, %24 : vector<8x128xf32>
    %c0_8 = arith.constant 0 : index
    %c0_9 = arith.constant 0 : index
    %26 = vector.load %arg4[%c0_8, %c0_9] : memref<1x128xf32, #tpu.memory_space<vmem>>, vector<1x128xf32>
    %27 = vector.broadcast %26 : vector<1x128xf32> to vector<8x128xf32>
    %28 = arith.mulf %25, %27 : vector<8x128xf32>
    %c0_10 = arith.constant 0 : index
    %c0_11 = arith.constant 0 : index
    %29 = vector.load %arg5[%c0_10, %c0_11] : memref<1x128xf32, #tpu.memory_space<vmem>>, vector<1x128xf32>
    %30 = vector.broadcast %29 : vector<1x128xf32> to vector<8x128xf32>
    %31 = arith.addf %28, %30 : vector<8x128xf32>
    %cst_12 = arith.constant 0.000000e+00 : f32
    %32 = vector.broadcast %cst_12 : f32 to vector<8x128xf32>
    %33 = arith.maximumf %31, %32 : vector<8x128xf32>
    %c0_13 = arith.constant 0 : index
    %c0_14 = arith.constant 0 : index
    %34 = vector.load %arg3[%c0_13, %c0_14] : memref<128x128xf32, #tpu.memory_space<vmem>>, vector<128x128xf32>
    %cst_15 = arith.constant dense<0.000000e+00> : vector<8x128xf32>
    %35 = tpu.matmul %33, %34, %cst_15 {dimension_numbers = #tpu.dot_dimension_numbers<[1], [0], [0], [1], [0, 0, 1, 1], [], []>} : vector<8x128xf32>, vector<128x128xf32>, vector<8x128xf32> -> vector<8x128xf32>
    %c0_16 = arith.constant 0 : index
    %c0_17 = arith.constant 0 : index
    %36 = vector.load %arg6[%c0_16, %c0_17] : memref<8x128xf32, #tpu.memory_space<vmem>>, vector<8x128xf32>
    tpu.vector_store %arg6[%c0_16, %c0_17], %35 {strides = array<i32>} : memref<8x128xf32, #tpu.memory_space<vmem>>, vector<8x128xf32>,
    return
  }
  func.func @transform_0(%arg0: i32) -> (i32, i32) {
    %c0_i32 = arith.constant 0 : i32
    %c0_i32_0 = arith.constant 0 : i32
    return %arg0, %c0_i32 : i32, i32
  }
  func.func @transform_1(%arg0: i32) -> (i32, i32) {
    %c0_i32 = arith.constant 0 : i32
    %c0_i32_0 = arith.constant 0 : i32
    %c0_i32_1 = arith.constant 0 : i32
    return %c0_i32, %c0_i32_0 : i32, i32
  }
  func.func @transform_2(%arg0: i32) -> (i32, i32) {
    %c0_i32 = arith.constant 0 : i32
    %c0_i32_0 = arith.constant 0 : i32
    %c0_i32_1 = arith.constant 0 : i32
    return %c0_i32, %c0_i32_0 : i32, i32
  }
  func.func @transform_3(%arg0: i32) -> (i32, i32) {
    %c0_i32 = arith.constant 0 : i32
    %c0_i32_0 = arith.constant 0 : i32
    %c0_i32_1 = arith.constant 0 : i32
    return %c0_i32, %c0_i32_0 : i32, i32
  }
  func.func @transform_4(%arg0: i32) -> (i32, i32) {
    %c0_i32 = arith.constant 0 : i32
    %c0_i32_0 = arith.constant 0 : i32
    %c0_i32_1 = arith.constant 0 : i32
    return %c0_i32, %c0_i32_0 : i32, i32
  }
  func.func @transform_5(%arg0: i32) -> (i32, i32) {
    %c0_i32 = arith.constant 0 : i32
    %c0_i32_0 = arith.constant 0 : i32
    return %arg0, %c0_i32 : i32, i32
  }
}

</mosaic_0001>

<llo_original>
// kernel: tpu_custom_call.1
$region0: #{tpu_custom_call.1}
  #allocation0 [shape = 'u32[]', space=smem, size = 0x4, offset = 0x4, fixed_abs, tag = 'smem constant byte address 0x4 - core index']
  #allocation1 [shape = 'u32[144,128]{1,0:T(1,128)}', space=vmem, size = 0x12000, scoped, tag = 'internal scratch']
  %s0 = inlined_call_operand.hbm [shape: f32[8,128], index: 0, kind: input, shape index: {}]
  %s1 = inlined_call_operand.hbm [shape: f32[128,128], index: 1, kind: input, shape index: {}]
  %s2 = inlined_call_operand.hbm [shape: f32[128,128], index: 2, kind: input, shape index: {}]
  %s3 = inlined_call_operand.vmem [shape: f32[1,128], index: 3, kind: input, shape index: {}]
  %s4 = inlined_call_operand.vmem [shape: f32[1,128], index: 4, kind: input, shape index: {}]
  %s5 = inlined_call_operand.hbm [shape: f32[8,128], index: 5, kind: output, shape index: {}]
  %s6 = sld [smem:[#allocation0]]
  $region42: #{tpu_custom_call.1} parent=0
    _
  %s8 = ssub.s32 1, %s6
  %s9 = scalar_select 0, %s8, %s6
  $region1: #{tpu_custom_call.1} parent=0
    #allocation2 [shape = 'u8[4096]{0}', space=vmem, size = 0x1000, scoped, tag = 'input window, operand 0, single buffered']
    #allocation3 [shape = 's32[1]{0}', space=sflag, size = 0x4, scoped, tag = 'scoped memory for tpu_custom_call.1']
    #allocation4 [shape = 's32[1]{0}', space=sflag, size = 0x4, scoped, tag = 'scoped memory for tpu_custom_call.1']
    #allocation5 [shape = 'u8[65536]{0}', space=vmem, size = 0x10000, scoped, tag = 'input window, operand 1, single buffered']
    #allocation6 [shape = 's32[1]{0}', space=sflag, size = 0x4, scoped, tag = 'scoped memory for tpu_custom_call.1']
    #allocation7 [shape = 'u8[65536]{0}', space=vmem, size = 0x10000, scoped, tag = 'input window, operand 2, single buffered']
    #allocation8 [shape = 'u8[4096]{0}', space=vmem, size = 0x1000, scoped, tag = 'output window, operand 0, single buffered']
    %10 = vsyncpa [#allocation3], 0
    %11 = vsyncpa [#allocation6], 0
    %12 = vsyncpa [#allocation4], 0
    // Predicated region
    $region2: #{tpu_custom_call.1} parent=1 // pred_check
      _
    $region3: #{tpu_custom_call.1} parent=1 // pred_check_branch
      %14 = sbr.rel (0) target = $region5
    $region4: #{tpu_custom_call.1} parent=1 // pred_region
      %s16 = ssub.s32 128, 128
      %17 = vsyncadd [#allocation3], %s16
      %s19 = sshll.u32 [#allocation2], 4
      %s20 = int_to_ptr.vmem [resolvable:$true] %s19
      %22 = dma.hbm_to_vmem [thread:$0]  %s0, 128, %s20, [#allocation3]
    $region5: #{tpu_custom_call.1} parent=1 // pred_fallthru
      _
    // Predicated region
    $region6: #{tpu_custom_call.1} parent=1 // pred_check
      _
    $region7: #{tpu_custom_call.1} parent=1 // pred_check_branch
      %24 = sbr.rel (0) target = $region9
    $region8: #{tpu_custom_call.1} parent=1 // pred_region
      %s26 = ssub.s32 2048, 2048
      %27 = vsyncadd [#allocation6], %s26
      %s28 = sshll.u32 [#allocation5], 4
      %s29 = int_to_ptr.vmem [resolvable:$true] %s28
      %34 = dma.hbm_to_vmem [thread:$0]  %s1, 2048, %s29, [#allocation6], 128, 128, 8
    $region9: #{tpu_custom_call.1} parent=1 // pred_fallthru
      _
    // Predicated region
    $region10: #{tpu_custom_call.1} parent=1 // pred_check
      _
    $region11: #{tpu_custom_call.1} parent=1 // pred_check_branch
      %36 = sbr.rel (0) target = $region13
    $region12: #{tpu_custom_call.1} parent=1 // pred_region
      %s38 = ssub.s32 2048, 2048
      %39 = vsyncadd [#allocation6], %s38
      %s40 = sshll.u32 [#allocation7], 4
      %s41 = int_to_ptr.vmem [resolvable:$true] %s40
      %46 = dma.hbm_to_vmem [thread:$0]  %s2, 2048, %s41, [#allocation6], 128, 128, 8
    $region13: #{tpu_custom_call.1} parent=1 // pred_fallthru
      _
    // Predicated region
    $region14: #{tpu_custom_call.1} parent=1 // pred_check
      _
    $region15: #{tpu_custom_call.1} parent=1 // pred_check_branch
      %48 = sbr.rel (0) target = $region17
    $region16: #{tpu_custom_call.1} parent=1 // pred_region
      _
    $region17: #{tpu_custom_call.1} parent=1 // pred_fallthru
      _
    // Predicated region
    $region18: #{tpu_custom_call.1} parent=1 // pred_check
      _
    $region19: #{tpu_custom_call.1} parent=1 // pred_check_branch
      %50 = sbr.rel (0) target = $region21
    $region20: #{tpu_custom_call.1} parent=1 // pred_region
      _
    $region21: #{tpu_custom_call.1} parent=1 // pred_fallthru
      _
    // Predicated region
    $region22: #{tpu_custom_call.1} parent=1 // pred_check
      _
    $region23: #{tpu_custom_call.1} parent=1 // pred_check_branch
      %52 = sbr.rel (0) target = $region25
    $region24: #{tpu_custom_call.1} parent=1 // pred_region
      %53 = dma.done [#allocation3], 128
    $region25: #{tpu_custom_call.1} parent=1 // pred_fallthru
      _
    // Predicated region
    $region26: #{tpu_custom_call.1} parent=1 // pred_check
      _
    $region27: #{tpu_custom_call.1} parent=1 // pred_check_branch
      %55 = sbr.rel (0) target = $region29
    $region28: #{tpu_custom_call.1} parent=1 // pred_region
      %56 = dma.done [#allocation6], 2048
    $region29: #{tpu_custom_call.1} parent=1 // pred_fallthru
      _
    // Predicated region
    $region30: #{tpu_custom_call.1} parent=1 // pred_check
      _
    $region31: #{tpu_custom_call.1} parent=1 // pred_check_branch
      %58 = sbr.rel (0) target = $region33
    $region32: #{tpu_custom_call.1} parent=1 // pred_region
      %59 = dma.done [#allocation6], 2048
    $region33: #{tpu_custom_call.1} parent=1 // pred_fallthru
      _
    %v60 = vld [vmem:[#allocation2] sm:$0xff]
    %v61 = vld [vmem:[#allocation5] sm:$0xff]
    %v62 = vld [vmem:[#allocation5 + $0x8] sm:$0xff]
    %v63 = vld [vmem:[#allocation5 + $0x10] sm:$0xff]
    %v64 = vld [vmem:[#allocation5 + $0x18] sm:$0xff]
    %v65 = vld [vmem:[#allocation5 + $0x20] sm:$0xff]
    %v66 = vld [vmem:[#allocation5 + $0x28] sm:$0xff]
    %v67 = vld [vmem:[#allocation5 + $0x30] sm:$0xff]
    %v68 = vld [vmem:[#allocation5 + $0x38] sm:$0xff]
    %v69 = vld [vmem:[#allocation5 + $0x40] sm:$0xff]
    %v70 = vld [vmem:[#allocation5 + $0x48] sm:$0xff]
    %v71 = vld [vmem:[#allocation5 + $0x50] sm:$0xff]
    %v72 = vld [vmem:[#allocation5 + $0x58] sm:$0xff]
    %v73 = vld [vmem:[#allocation5 + $0x60] sm:$0xff]
    %v74 = vld [vmem:[#allocation5 + $0x68] sm:$0xff]
    %v75 = vld [vmem:[#allocation5 + $0x70] sm:$0xff]
    %v76 = vld [vmem:[#allocation5 + $0x78] sm:$0xff]
    %77 = vmatprep.subr.mxu0 0.0
    %78 = vmatpush1.msra.mxu0 %v76
    %79 = vmatprep.subr.mxu0 0.0
    %80 = vmatpush1.msra.mxu0 %v75
    %81 = vmatprep.subr.mxu0 0.0
    %82 = vmatpush1.msra.mxu0 %v74
    %83 = vmatprep.subr.mxu0 0.0
    %84 = vmatpush1.msra.mxu0 %v73
    %85 = vmatprep.subr.mxu0 0.0
    %86 = vmatpush1.msra.mxu0 %v72
    %87 = vmatprep.subr.mxu0 0.0
    %88 = vmatpush1.msra.mxu0 %v71
    %89 = vmatprep.subr.mxu0 0.0
    %90 = vmatpush1.msra.mxu0 %v70
    %91 = vmatprep.subr.mxu0 0.0
    %92 = vmatpush1.msra.mxu0 %v69
    %93 = vmatprep.subr.mxu0 0.0
    %94 = vmatpush1.msra.mxu0 %v68
    %95 = vmatprep.subr.mxu0 0.0
    %96 = vmatpush1.msra.mxu0 %v67
    %97 = vmatprep.subr.mxu0 0.0
    %98 = vmatpush1.msra.mxu0 %v66
    %99 = vmatprep.subr.mxu0 0.0
    %100 = vmatpush1.msra.mxu0 %v65
    %101 = vmatprep.subr.mxu0 0.0
    %102 = vmatpush1.msra.mxu0 %v64
    %103 = vmatprep.subr.mxu0 0.0
    %104 = vmatpush1.msra.mxu0 %v63
    %105 = vmatprep.subr.mxu0 0.0
    %106 = vmatpush1.msra.mxu0 %v62
    %107 = vmatprep.subr.mxu0 0.0
    %108 = vmatpush1.msra.mxu0 %v61
    %109 = vmatprep.subr.mxu0 0.0
    %110 = vmatpush2.msra.mxu0 0.0
    %111 = vmatprep.subr.mxu0 0.0
    %112 = vmatpush2.msra.mxu0 0.0
    %113 = vmatprep.subr.mxu0 0.0
    %114 = vmatpush2.msra.mxu0 0.0
    %115 = vmatprep.subr.mxu0 0.0
    %116 = vmatpush2.msra.mxu0 0.0
    %117 = vmatprep.subr.mxu0 0.0
    %118 = vmatpush2.msra.mxu0 0.0
    %119 = vmatprep.subr.mxu0 0.0
    %120 = vmatpush2.msra.mxu0 0.0
    %121 = vmatprep.subr.mxu0 0.0
    %122 = vmatpush2.msra.mxu0 0.0
    %123 = vmatprep.subr.mxu0 0.0
    %124 = vmatpush2.msra.mxu0 0.0
    %125 = vmatprep.subr.mxu0 0.0
    %126 = vmatpush2.msra.mxu0 0.0
    %127 = vmatprep.subr.mxu0 0.0
    %128 = vmatpush2.msra.mxu0 0.0
    %129 = vmatprep.subr.mxu0 0.0
    %130 = vmatpush2.msra.mxu0 0.0
    %131 = vmatprep.subr.mxu0 0.0
    %132 = vmatpush2.msra.mxu0 0.0
    %133 = vmatprep.subr.mxu0 0.0
    %134 = vmatpush2.msra.mxu0 0.0
    %135 = vmatprep.subr.mxu0 0.0
    %136 = vmatpush2.msra.mxu0 0.0
    %137 = vmatprep.subr.mxu0 0.0
    %138 = vmatpush2.msra.mxu0 0.0
    %139 = vmatprep.subr.mxu0 0.0
    %140 = vmatpush2.msra.mxu0 0.0
    %141 = vmatprep.mubr.f32.mxu0 0.0
    %142 = vmatmul.mubr.f32.gmra.mxu0 %v60
    %v143 = vpop.f32.mrf.mxu0
    %v144 = vadd.f32 0.0, %v143
    %v145 = vpop.f32.mrf.mxu0
    %146 = vdwg.mxu0
    %147 = vadd.xlane.f32.xlu0 %v144
    %v148 = vpop.xlane.xlu0 %147
    %v149 = vmul.f32 %v148, 0.03125
    %v150 = vsub.f32 %v144, %v149
    %v151 = vlaneseq
    %v152 = vand.u32 %v151, 127
    %vm153 = vcmp.lt.s32.totalorder %v152, 32
    %v154 = vsel %vm153, 1, 0
    %v155 = vcvt.s32.f32 %v154
    %v156 = vmul.f32 %v150, %v155
    %v157 = vmul.f32 %v156, %v156
    %158 = vadd.xlane.f32.xlu0 %v157
    %v159 = vpop.xlane.xlu0 %158
    %v160 = vmul.f32 %v159, 0.03125
    %v161 = vadd.f32 %v160, 1e-05
    %v162 = vrsqrt.pop %v161
    %v163 = vmul.f32 %v156, %v162
    %v164 = vld [vmem:[%s3] sm:$0x1]
    %v166 = vlaneseq
    %v167 = vshrl.u32 %v166, 7
    %v168 = vsub.s32 0, %v167
    %v169 = vrot.slane %v164, %v168
    %v171 = vmul.f32 %v163, %v169
    %v172 = vld [vmem:[%s4] sm:$0x1]
    %v174 = vlaneseq
    %v175 = vshrl.u32 %v174, 7
    %v176 = vsub.s32 0, %v175
    %v177 = vrot.slane %v172, %v176
    %v179 = vadd.f32 %v171, %v177
    %v180 = vmax.f32 %v179, 0.0
    %v181 = vld [vmem:[#allocation7] sm:$0xff]
    %v182 = vld [vmem:[#allocation7 + $0x8] sm:$0xff]
    %v183 = vld [vmem:[#allocation7 + $0x10] sm:$0xff]
    %v184 = vld [vmem:[#allocation7 + $0x18] sm:$0xff]
    %v185 = vld [vmem:[#allocation7 + $0x20] sm:$0xff]
    %v186 = vld [vmem:[#allocation7 + $0x28] sm:$0xff]
    %v187 = vld [vmem:[#allocation7 + $0x30] sm:$0xff]
    %v188 = vld [vmem:[#allocation7 + $0x38] sm:$0xff]
    %v189 = vld [vmem:[#allocation7 + $0x40] sm:$0xff]
    %v190 = vld [vmem:[#allocation7 + $0x48] sm:$0xff]
    %v191 = vld [vmem:[#allocation7 + $0x50] sm:$0xff]
    %v192 = vld [vmem:[#allocation7 + $0x58] sm:$0xff]
    %v193 = vld [vmem:[#allocation7 + $0x60] sm:$0xff]
    %v194 = vld [vmem:[#allocation7 + $0x68] sm:$0xff]
    %v195 = vld [vmem:[#allocation7 + $0x70] sm:$0xff]
    %v196 = vld [vmem:[#allocation7 + $0x78] sm:$0xff]
    %197 = vmatprep.subr.mxu0 0.0
    %198 = vmatpush1.msra.mxu0 %v196
    %199 = vmatprep.subr.mxu0 0.0
    %200 = vmatpush1.msra.mxu0 %v195
    %201 = vmatprep.subr.mxu0 0.0
    %202 = vmatpush1.msra.mxu0 %v194
    %203 = vmatprep.subr.mxu0 0.0
    %204 = vmatpush1.msra.mxu0 %v193
    %205 = vmatprep.subr.mxu0 0.0
    %206 = vmatpush1.msra.mxu0 %v192
    %207 = vmatprep.subr.mxu0 0.0
    %208 = vmatpush1.msra.mxu0 %v191
    %209 = vmatprep.subr.mxu0 0.0
    %210 = vmatpush1.msra.mxu0 %v190
    %211 = vmatprep.subr.mxu0 0.0
    %212 = vmatpush1.msra.mxu0 %v189
    %213 = vmatprep.subr.mxu0 0.0
    %214 = vmatpush1.msra.mxu0 %v188
    %215 = vmatprep.subr.mxu0 0.0
    %216 = vmatpush1.msra.mxu0 %v187
    %217 = vmatprep.subr.mxu0 0.0
    %218 = vmatpush1.msra.mxu0 %v186
    %219 = vmatprep.subr.mxu0 0.0
    %220 = vmatpush1.msra.mxu0 %v185
    %221 = vmatprep.subr.mxu0 0.0
    %222 = vmatpush1.msra.mxu0 %v184
    %223 = vmatprep.subr.mxu0 0.0
    %224 = vmatpush1.msra.mxu0 %v183
    %225 = vmatprep.subr.mxu0 0.0
    %226 = vmatpush1.msra.mxu0 %v182
    %227 = vmatprep.subr.mxu0 0.0
    %228 = vmatpush1.msra.mxu0 %v181
    %229 = vmatprep.subr.mxu0 0.0
    %230 = vmatpush2.msra.mxu0 0.0
    %231 = vmatprep.subr.mxu0 0.0
    %232 = vmatpush2.msra.mxu0 0.0
    %233 = vmatprep.subr.mxu0 0.0
    %234 = vmatpush2.msra.mxu0 0.0
    %235 = vmatprep.subr.mxu0 0.0
    %236 = vmatpush2.msra.mxu0 0.0
    %237 = vmatprep.subr.mxu0 0.0
    %238 = vmatpush2.msra.mxu0 0.0
    %239 = vmatprep.subr.mxu0 0.0
    %240 = vmatpush2.msra.mxu0 0.0
    %241 = vmatprep.subr.mxu0 0.0
    %242 = vmatpush2.msra.mxu0 0.0
    %243 = vmatprep.subr.mxu0 0.0
    %244 = vmatpush2.msra.mxu0 0.0
    %245 = vmatprep.subr.mxu0 0.0
    %246 = vmatpush2.msra.mxu0 0.0
    %247 = vmatprep.subr.mxu0 0.0
    %248 = vmatpush2.msra.mxu0 0.0
    %249 = vmatprep.subr.mxu0 0.0
    %250 = vmatpush2.msra.mxu0 0.0
    %251 = vmatprep.subr.mxu0 0.0
    %252 = vmatpush2.msra.mxu0 0.0
    %253 = vmatprep.subr.mxu0 0.0
    %254 = vmatpush2.msra.mxu0 0.0
    %255 = vmatprep.subr.mxu0 0.0
    %256 = vmatpush2.msra.mxu0 0.0
    %257 = vmatprep.subr.mxu0 0.0
    %258 = vmatpush2.msra.mxu0 0.0
    %259 = vmatprep.subr.mxu0 0.0
    %260 = vmatpush2.msra.mxu0 0.0
    %261 = vmatprep.mubr.f32.mxu0 0.0
    %262 = vmatmul.mubr.f32.gmra.mxu0 %v180
    %v263 = vpop.f32.mrf.mxu0
    %v264 = vadd.f32 0.0, %v263
    %v265 = vpop.f32.mrf.mxu0
    %266 = vdwg.mxu0
    %267 = vst [vmem:[#allocation8] sm:$0xff] %v264
    // Predicated region
    $region34: #{tpu_custom_call.1} parent=1 // pred_check
      _
    $region35: #{tpu_custom_call.1} parent=1 // pred_check_branch
      %269 = sbr.rel (0) target = $region37
    $region36: #{tpu_custom_call.1} parent=1 // pred_region
      %s271 = ssub.s32 128, 128
      %272 = vsyncadd [#allocation4], %s271
      %s274 = sshll.u32 [#allocation8], 4
      %s275 = int_to_ptr.vmem [resolvable:$true] %s274
      %277 = dma.vmem_to_hbm [thread:$0]  %s275, 128, %s5, [#allocation4]
    $region37: #{tpu_custom_call.1} parent=1 // pred_fallthru
      _
    // Predicated region
    $region38: #{tpu_custom_call.1} parent=1 // pred_check
      _
    $region39: #{tpu_custom_call.1} parent=1 // pred_check_branch
      %279 = sbr.rel (0) target = $region41
    $region40: #{tpu_custom_call.1} parent=1 // pred_region
      %280 = dma.done [#allocation4], 128
    $region41: #{tpu_custom_call.1} parent=1 // pred_fallthru
      _
    %281 = vsyncpa [#allocation3], 1
    %282 = vsyncpa [#allocation6], 1
    %283 = vsyncpa [#allocation4], 1

</llo_original>
